<compile_context>
chip_gen: v7x
topology: tpu7x:2x2x1
jax: 0.10.0
libtpu: 0.0.40
codegen_flags: <defaults>
</compile_context>

<pallas_src>
import functools

import jax
import jax.numpy as jnp
from jax.experimental import pallas as pl
from jax.experimental.pallas import tpu as pltpu

LANE = 128      # vreg lane width: feature dims padded to this (lane-dense stores)
SUBLANE = 8     # f32 sublane count: batch tile size


def _round_up(n, m):
    return (n + m - 1) // m * m


def _fused_mlp_kernel(*refs, n_layers: int):
    """One batch tile of the fused MLP: y = (...ReLU(x@W1+b1)...)@Wn+bn.

    refs layout: (x_ref, w1_ref, b1_ref, ..., wn_ref, bn_ref, o_ref).
    Weights are pre-transposed + lane-padded bf16 (Din_pad, Dout_pad); biases
    are f32, lane-padded and pre-replicated to SUBLANE rows.  Matmuls run on
    the MXU in bf16 with f32 accumulation; bias add / ReLU stay in f32.
    """
    x_ref = refs[0]
    o_ref = refs[-1]
    wb_refs = refs[1:-1]

    x = x_ref[...].astype(jnp.float32)
    for j in range(n_layers):
        w = wb_refs[2 * j][...]                       # bf16 (Din_pad, Dout_pad)
        b = wb_refs[2 * j + 1][...]                   # f32  (SUBLANE, Dout_pad)
        x = jnp.dot(x.astype(jnp.bfloat16), w,
                    preferred_element_type=jnp.float32) + b
        if j != n_layers - 1:                         # nonlinearity between layers only
            x = jnp.maximum(x, 0.0)
    o_ref[...] = x.astype(o_ref.dtype)


def fused_mlp_forward(x, wts, bs, *, dout):
    """x: (B, Din). wts[j]: bf16 (Din_pad_j, Dout_pad_j). bs[j]: f32 (SUBLANE, Dout_pad_j).
    Returns (B, dout) after slicing away lane padding."""
    n_layers = len(wts)
    B, din = x.shape
    b_pad = _round_up(B, SUBLANE)
    if b_pad != B:
        x = jnp.pad(x, ((0, b_pad - B), (0, 0)))
    dlast_pad = wts[-1].shape[1]

    args = [x]
    in_specs = [pl.BlockSpec((SUBLANE, din), lambda i: (i, 0))]
    flops = 0
    bytes_accessed = x.size * x.dtype.itemsize + b_pad * dlast_pad * 4
    for w, b in zip(wts, bs):
        args.append(w)
        args.append(b)
        in_specs.append(pl.BlockSpec(w.shape, lambda i: (0, 0)))   # weights resident
        in_specs.append(pl.BlockSpec(b.shape, lambda i: (0, 0)))
        flops += 2 * b_pad * w.shape[0] * w.shape[1]
        bytes_accessed += w.size * w.dtype.itemsize + b.size * b.dtype.itemsize

    kernel = functools.partial(_fused_mlp_kernel, n_layers=n_layers)
    out = pl.pallas_call(
        kernel,
        out_shape=jax.ShapeDtypeStruct((b_pad, dlast_pad), x.dtype),
        grid=(b_pad // SUBLANE,),                       # batch axis, megacore-shardable
        in_specs=in_specs,
        out_specs=pl.BlockSpec((SUBLANE, dlast_pad), lambda i: (i, 0)),
        compiler_params=pltpu.CompilerParams(
            dimension_semantics=("parallel",)),
        cost_estimate=pl.CostEstimate(flops=flops, transcendentals=0,
                                      bytes_accessed=bytes_accessed),
    )(*args)
    return out[:B, :dout]


class DenseNetPallas:
    """Mirror of the PyTorch DenseNet: nn.Linear layers with ReLU between them;
    default configuration (normalize=False, out_nonlinearity=None)."""
    # TODO(synk): BatchNorm1d branch (normalize=True) and out_nonlinearity are
    # not exercised by the default constructor and are not implemented here.

    def __init__(self, layers, key, dtype=jnp.float32):
        self.n_layers = len(layers) - 1
        assert self.n_layers >= 1
        self.layers = list(layers)
        self.params = []   # (w, b) in PyTorch layout, f32, for the pure-f32 reference
        self.wts = []      # bf16, pre-transposed + lane-padded (Din_pad, Dout_pad)
        self.bs = []       # f32, lane-padded + sublane-replicated (SUBLANE, Dout_pad)
        din_pad = layers[0]                     # first layer keeps the raw input width
        for j in range(self.n_layers):
            fan_in, fan_out = layers[j], layers[j + 1]
            dout_pad = _round_up(fan_out, LANE)
            key, wk, bk = jax.random.split(key, 3)
            # Deterministic init mimicking PyTorch's default U(-1/sqrt(fan_in), +)
            bound = 1.0 / (fan_in ** 0.5)
            w = jax.random.uniform(wk, (fan_out, fan_in), dtype, -bound, bound)
            b = jax.random.uniform(bk, (fan_out,), dtype, -bound, bound)
            self.params.append((w, b))
            # Pre-transpose, zero-pad to lane width, cast to bf16 ONCE at init.
            w_pad = jnp.zeros((din_pad, dout_pad), jnp.float32)
            w_pad = w_pad.at[:fan_in, :fan_out].set(w.T.astype(jnp.float32))
            self.wts.append(w_pad.astype(jnp.bfloat16))
            b_pad = jnp.zeros((dout_pad,), jnp.float32).at[:fan_out].set(
                b.astype(jnp.float32))
            self.bs.append(jnp.tile(b_pad[None, :], (SUBLANE, 1)))
            din_pad = dout_pad

        # Single jitted forward: one device dispatch, one pallas_call.
        self._forward = jax.jit(
            functools.partial(fused_mlp_forward, dout=layers[-1]))

    def __call__(self, x):
        return self._forward(x, tuple(self.wts), tuple(self.bs))


def densenet_ref_f32(x, params):
    """Pure-JAX f32 reference with PyTorch semantics (unquantized weights)."""
    n = len(params)
    for j, (w, b) in enumerate(params):
        x = x @ w.T + b
        if j != n - 1:
            x = jnp.maximum(x, 0.0)
    return x


def densenet_ref_bf16(x, wts, bs, dout):
    """Reference that matches the kernel's quantization exactly:
    bf16 operands, f32 accumulation, f32 bias/ReLU, padded feature dims."""
    n = len(wts)
    x = x.astype(jnp.float32)
    for j in range(n):
        x = jnp.dot(x.astype(jnp.bfloat16), wts[j],
                    preferred_element_type=jnp.float32) + bs[j][0]
        if j != n - 1:
            x = jnp.maximum(x, 0.0)
    return x[:, :dout]


if __name__ == "__main__":
    key = jax.random.PRNGKey(0)
    layers = [32, 64, 64, 16]        # DenseNet([32, 64, 64, 16], nn.ReLU)
    batch = 8

    key, xk, pk = jax.random.split(key, 3)
    x = jax.random.normal(xk, (batch, layers[0]), jnp.float32)

    model = DenseNetPallas(layers, pk)
    out = jax.block_until_ready(model(x))
    assert out.shape == (batch, layers[-1])

    # Strict check vs a reference using the SAME bf16-quantized weights.
    ref_exact = densenet_ref_bf16(x, model.wts, model.bs, layers[-1])
    assert jnp.allclose(out, ref_exact, atol=1e-4, rtol=1e-4), \
        float(jnp.max(jnp.abs(out - ref_exact)))

    # Loose check vs the pure-f32 PyTorch-semantics reference (bf16 quant noise).
    ref_f32 = densenet_ref_f32(x, model.params)
    assert jnp.allclose(out, ref_f32, atol=3e-2, rtol=3e-2), \
        float(jnp.max(jnp.abs(out - ref_f32)))

    print("KERNEL_OK")
</pallas_src>

<mosaic_0001>
module attributes {stable_mosaic.version = 11 : i64} {
  func.func @_fused_mlp_kernel(%arg0: i32, %arg1: memref<8x32xf32, #tpu.memory_space<vmem>>, %arg2: memref<32x128xbf16, #tpu.memory_space<vmem>>, %arg3: memref<8x128xf32, #tpu.memory_space<vmem>>, %arg4: memref<128x128xbf16, #tpu.memory_space<vmem>>, %arg5: memref<8x128xf32, #tpu.memory_space<vmem>>, %arg6: memref<128x128xbf16, #tpu.memory_space<vmem>>, %arg7: memref<8x128xf32, #tpu.memory_space<vmem>>, %arg8: memref<8x128xf32, #tpu.memory_space<vmem>>) attributes {dimension_semantics = [#tpu.dimension_semantics<parallel>], iteration_bounds = array<i64: 1>, scalar_prefetch = 0 : i64, scratch_operands = 0 : i64, tpu.core_type = #tpu.core_type<tc>, window_params = [{transform_indices = @transform_0, window_bounds = array<i64: 8, 32>}, {pipeline_mode = #tpu.pipeline_mode<synchronous>, transform_indices = @transform_1, window_bounds = array<i64: 32, 128>}, {pipeline_mode = #tpu.pipeline_mode<synchronous>, transform_indices = @transform_2, window_bounds = array<i64: 8, 128>}, {pipeline_mode = #tpu.pipeline_mode<synchronous>, transform_indices = @transform_3, window_bounds = array<i64: 128, 128>}, {pipeline_mode = #tpu.pipeline_mode<synchronous>, transform_indices = @transform_4, window_bounds = array<i64: 8, 128>}, {pipeline_mode = #tpu.pipeline_mode<synchronous>, transform_indices = @transform_5, window_bounds = array<i64: 128, 128>}, {pipeline_mode = #tpu.pipeline_mode<synchronous>, transform_indices = @transform_6, window_bounds = array<i64: 8, 128>}, {transform_indices = @transform_7, window_bounds = array<i64: 8, 128>}]} {
    %c0 = arith.constant 0 : index
    %c0_0 = arith.constant 0 : index
    %0 = vector.load %arg1[%c0, %c0_0] : memref<8x32xf32, #tpu.memory_space<vmem>>, vector<8x32xf32>
    %c0_1 = arith.constant 0 : index
    %c0_2 = arith.constant 0 : index
    %1 = vector.load %arg2[%c0_1, %c0_2] : memref<32x128xbf16, #tpu.memory_space<vmem>>, vector<32x128xbf16>
    %c0_3 = arith.constant 0 : index
    %c0_4 = arith.constant 0 : index
    %2 = vector.load %arg3[%c0_3, %c0_4] : memref<8x128xf32, #tpu.memory_space<vmem>>, vector<8x128xf32>
    %3 = arith.truncf %0 : vector<8x32xf32> to vector<8x32xbf16>
    %cst = arith.constant dense<0.000000e+00> : vector<8x128xf32>
    %4 = tpu.matmul %3, %1, %cst {dimension_numbers = #tpu.dot_dimension_numbers<[1], [0], [0], [1], [0, 0, 1, 1], [], []>} : vector<8x32xbf16>, vector<32x128xbf16>, vector<8x128xf32> -> vector<8x128xf32>
    %5 = arith.addf %4, %2 : vector<8x128xf32>
    %cst_5 = arith.constant 0.000000e+00 : f32
    %6 = vector.broadcast %cst_5 : f32 to vector<8x128xf32>
    %7 = arith.maximumf %5, %6 : vector<8x128xf32>
    %c0_6 = arith.constant 0 : index
    %c0_7 = arith.constant 0 : index
    %8 = vector.load %arg4[%c0_6, %c0_7] : memref<128x128xbf16, #tpu.memory_space<vmem>>, vector<128x128xbf16>
    %c0_8 = arith.constant 0 : index
    %c0_9 = arith.constant 0 : index
    %9 = vector.load %arg5[%c0_8, %c0_9] : memref<8x128xf32, #tpu.memory_space<vmem>>, vector<8x128xf32>
    %10 = arith.truncf %7 : vector<8x128xf32> to vector<8x128xbf16>
    %cst_10 = arith.constant dense<0.000000e+00> : vector<8x128xf32>
    %11 = tpu.matmul %10, %8, %cst_10 {dimension_numbers = #tpu.dot_dimension_numbers<[1], [0], [0], [1], [0, 0, 1, 1], [], []>} : vector<8x128xbf16>, vector<128x128xbf16>, vector<8x128xf32> -> vector<8x128xf32>
    %12 = arith.addf %11, %9 : vector<8x128xf32>
    %cst_11 = arith.constant 0.000000e+00 : f32
    %13 = vector.broadcast %cst_11 : f32 to vector<8x128xf32>
    %14 = arith.maximumf %12, %13 : vector<8x128xf32>
    %c0_12 = arith.constant 0 : index
    %c0_13 = arith.constant 0 : index
    %15 = vector.load %arg6[%c0_12, %c0_13] : memref<128x128xbf16, #tpu.memory_space<vmem>>, vector<128x128xbf16>
    %c0_14 = arith.constant 0 : index
    %c0_15 = arith.constant 0 : index
    %16 = vector.load %arg7[%c0_14, %c0_15] : memref<8x128xf32, #tpu.memory_space<vmem>>, vector<8x128xf32>
    %17 = arith.truncf %14 : vector<8x128xf32> to vector<8x128xbf16>
    %cst_16 = arith.constant dense<0.000000e+00> : vector<8x128xf32>
    %18 = tpu.matmul %17, %15, %cst_16 {dimension_numbers = #tpu.dot_dimension_numbers<[1], [0], [0], [1], [0, 0, 1, 1], [], []>} : vector<8x128xbf16>, vector<128x128xbf16>, vector<8x128xf32> -> vector<8x128xf32>
    %19 = arith.addf %18, %16 : vector<8x128xf32>
    %c0_17 = arith.constant 0 : index
    %c0_18 = arith.constant 0 : index
    %20 = vector.load %arg8[%c0_17, %c0_18] : memref<8x128xf32, #tpu.memory_space<vmem>>, vector<8x128xf32>
    tpu.vector_store %arg8[%c0_17, %c0_18], %19 {strides = array<i32>} : memref<8x128xf32, #tpu.memory_space<vmem>>, vector<8x128xf32>,
    return
  }
  func.func @transform_0(%arg0: i32) -> (i32, i32) {
    %c0_i32 = arith.constant 0 : i32
    %c0_i32_0 = arith.constant 0 : i32
    return %arg0, %c0_i32 : i32, i32
  }
  func.func @transform_1(%arg0: i32) -> (i32, i32) {
    %c0_i32 = arith.constant 0 : i32
    %c0_i32_0 = arith.constant 0 : i32
    %c0_i32_1 = arith.constant 0 : i32
    return %c0_i32, %c0_i32_0 : i32, i32
  }
  func.func @transform_2(%arg0: i32) -> (i32, i32) {
    %c0_i32 = arith.constant 0 : i32
    %c0_i32_0 = arith.constant 0 : i32
    %c0_i32_1 = arith.constant 0 : i32
    return %c0_i32, %c0_i32_0 : i32, i32
  }
  func.func @transform_3(%arg0: i32) -> (i32, i32) {
    %c0_i32 = arith.constant 0 : i32
    %c0_i32_0 = arith.constant 0 : i32
    %c0_i32_1 = arith.constant 0 : i32
    return %c0_i32, %c0_i32_0 : i32, i32
  }
  func.func @transform_4(%arg0: i32) -> (i32, i32) {
    %c0_i32 = arith.constant 0 : i32
    %c0_i32_0 = arith.constant 0 : i32
    %c0_i32_1 = arith.constant 0 : i32
    return %c0_i32, %c0_i32_0 : i32, i32
  }
  func.func @transform_5(%arg0: i32) -> (i32, i32) {
    %c0_i32 = arith.constant 0 : i32
    %c0_i32_0 = arith.constant 0 : i32
    %c0_i32_1 = arith.constant 0 : i32
    return %c0_i32, %c0_i32_0 : i32, i32
  }
  func.func @transform_6(%arg0: i32) -> (i32, i32) {
    %c0_i32 = arith.constant 0 : i32
    %c0_i32_0 = arith.constant 0 : i32
    %c0_i32_1 = arith.constant 0 : i32
    return %c0_i32, %c0_i32_0 : i32, i32
  }
  func.func @transform_7(%arg0: i32) -> (i32, i32) {
    %c0_i32 = arith.constant 0 : i32
    %c0_i32_0 = arith.constant 0 : i32
    return %arg0, %c0_i32 : i32, i32
  }
}

</mosaic_0001>

<llo_original>
// kernel: fused_mlp_forward.1
$region0: #{fused_mlp_forward.1}
  #allocation0 [shape = 'u32[]', space=smem, size = 0x4, offset = 0x4, fixed_abs, tag = 'smem constant byte address 0x4 - core index']
  #allocation1 [shape = 'u32[144,128]{1,0:T(1,128)}', space=vmem, size = 0x12000, scoped, tag = 'internal scratch']
  %s0 = inlined_call_operand.hbm [shape: f32[8,32], index: 0, kind: input, shape index: {}]
  %s1 = inlined_call_operand.hbm [shape: bf16[32,128], index: 1, kind: input, shape index: {}]
  %s2 = inlined_call_operand.vmem [shape: f32[8,128], index: 2, kind: input, shape index: {}]
  %s3 = inlined_call_operand.hbm [shape: bf16[128,128], index: 3, kind: input, shape index: {}]
  %s4 = inlined_call_operand.vmem [shape: f32[8,128], index: 4, kind: input, shape index: {}]
  %s5 = inlined_call_operand.hbm [shape: bf16[128,128], index: 5, kind: input, shape index: {}]
  %s6 = inlined_call_operand.hbm [shape: f32[8,128], index: 6, kind: input, shape index: {}]
  %s7 = inlined_call_operand.hbm [shape: f32[8,128], index: 7, kind: output, shape index: {}]
  %s8 = sld [smem:[#allocation0]]
  $region58: #{fused_mlp_forward.1} parent=0
    _
  %s10 = ssub.s32 1, %s8
  %s11 = scalar_select 0, %s10, %s8
  $region1: #{fused_mlp_forward.1} parent=0
    #allocation2 [shape = 'u8[4096]{0}', space=vmem, size = 0x1000, scoped, tag = 'input window, operand 0, single buffered']
    #allocation3 [shape = 's32[1]{0}', space=sflag, size = 0x4, scoped, tag = 'scoped memory for fused_mlp_forward.1']
    #allocation4 [shape = 's32[1]{0}', space=sflag, size = 0x4, scoped, tag = 'scoped memory for fused_mlp_forward.1']
    #allocation5 [shape = 'u8[8192]{0}', space=vmem, size = 0x2000, scoped, tag = 'input window, operand 1, single buffered']
    #allocation6 [shape = 's32[1]{0}', space=sflag, size = 0x4, scoped, tag = 'scoped memory for fused_mlp_forward.1']
    #allocation7 [shape = 'u8[32768]{0}', space=vmem, size = 0x8000, scoped, tag = 'input window, operand 3, single buffered']
    #allocation8 [shape = 'u8[32768]{0}', space=vmem, size = 0x8000, scoped, tag = 'input window, operand 5, single buffered']
    #allocation9 [shape = 's32[1]{0}', space=sflag, size = 0x4, scoped, tag = 'scoped memory for fused_mlp_forward.1']
    #allocation10 [shape = 'u8[4096]{0}', space=vmem, size = 0x1000, scoped, tag = 'input window, operand 6, single buffered']
    #allocation11 [shape = 'u8[4096]{0}', space=vmem, size = 0x1000, scoped, tag = 'output window, operand 0, single buffered']
    %12 = vsyncpa [#allocation3], 0
    %13 = vsyncpa [#allocation6], 0
    %14 = vsyncpa [#allocation9], 0
    %15 = vsyncpa [#allocation4], 0
    // Predicated region
    $region2: #{fused_mlp_forward.1} parent=1 // pred_check
      _
    $region3: #{fused_mlp_forward.1} parent=1 // pred_check_branch
      %17 = sbr.rel (0) target = $region5
    $region4: #{fused_mlp_forward.1} parent=1 // pred_region
      %s19 = ssub.s32 128, 128
      %20 = vsyncadd [#allocation3], %s19
      %s22 = sshll.u32 [#allocation2], 4
      %s23 = int_to_ptr.vmem [resolvable:$true] %s22
      %25 = dma.hbm_to_vmem [thread:$0]  %s0, 128, %s23, [#allocation3]
    $region5: #{fused_mlp_forward.1} parent=1 // pred_fallthru
      _
    // Predicated region
    $region6: #{fused_mlp_forward.1} parent=1 // pred_check
      _
    $region7: #{fused_mlp_forward.1} parent=1 // pred_check_branch
      %27 = sbr.rel (0) target = $region9
    $region8: #{fused_mlp_forward.1} parent=1 // pred_region
      %s29 = ssub.s32 256, 256
      %30 = vsyncadd [#allocation6], %s29
      %s31 = sshll.u32 [#allocation5], 4
      %s32 = int_to_ptr.vmem [resolvable:$true] %s31
      %37 = dma.hbm_to_vmem [thread:$0]  %s1, 256, %s32, [#allocation6], 64, 64, 4
    $region9: #{fused_mlp_forward.1} parent=1 // pred_fallthru
      _
    // Predicated region
    $region10: #{fused_mlp_forward.1} parent=1 // pred_check
      _
    $region11: #{fused_mlp_forward.1} parent=1 // pred_check_branch
      %39 = sbr.rel (0) target = $region13
    $region12: #{fused_mlp_forward.1} parent=1 // pred_region
      _
    $region13: #{fused_mlp_forward.1} parent=1 // pred_fallthru
      _
    // Predicated region
    $region14: #{fused_mlp_forward.1} parent=1 // pred_check
      _
    $region15: #{fused_mlp_forward.1} parent=1 // pred_check_branch
      %41 = sbr.rel (0) target = $region17
    $region16: #{fused_mlp_forward.1} parent=1 // pred_region
      %s43 = ssub.s32 1024, 1024
      %44 = vsyncadd [#allocation6], %s43
      %s45 = sshll.u32 [#allocation7], 4
      %s46 = int_to_ptr.vmem [resolvable:$true] %s45
      %51 = dma.hbm_to_vmem [thread:$0]  %s3, 1024, %s46, [#allocation6], 64, 64, 4
    $region17: #{fused_mlp_forward.1} parent=1 // pred_fallthru
      _
    // Predicated region
    $region18: #{fused_mlp_forward.1} parent=1 // pred_check
      _
    $region19: #{fused_mlp_forward.1} parent=1 // pred_check_branch
      %53 = sbr.rel (0) target = $region21
    $region20: #{fused_mlp_forward.1} parent=1 // pred_region
      _
    $region21: #{fused_mlp_forward.1} parent=1 // pred_fallthru
      _
    // Predicated region
    $region22: #{fused_mlp_forward.1} parent=1 // pred_check
      _
    $region23: #{fused_mlp_forward.1} parent=1 // pred_check_branch
      %55 = sbr.rel (0) target = $region25
    $region24: #{fused_mlp_forward.1} parent=1 // pred_region
      %s57 = ssub.s32 1024, 1024
      %58 = vsyncadd [#allocation9], %s57
      %s59 = sshll.u32 [#allocation8], 4
      %s60 = int_to_ptr.vmem [resolvable:$true] %s59
      %65 = dma.hbm_to_vmem [thread:$0]  %s5, 1024, %s60, [#allocation9], 64, 64, 4
    $region25: #{fused_mlp_forward.1} parent=1 // pred_fallthru
      _
    // Predicated region
    $region26: #{fused_mlp_forward.1} parent=1 // pred_check
      _
    $region27: #{fused_mlp_forward.1} parent=1 // pred_check_branch
      %67 = sbr.rel (0) target = $region29
    $region28: #{fused_mlp_forward.1} parent=1 // pred_region
      %s69 = ssub.s32 128, 128
      %70 = vsyncadd [#allocation9], %s69
      %s72 = sshll.u32 [#allocation10], 4
      %s73 = int_to_ptr.vmem [resolvable:$true] %s72
      %75 = dma.hbm_to_vmem [thread:$0]  %s6, 128, %s73, [#allocation9]
    $region29: #{fused_mlp_forward.1} parent=1 // pred_fallthru
      _
    // Predicated region
    $region30: #{fused_mlp_forward.1} parent=1 // pred_check
      _
    $region31: #{fused_mlp_forward.1} parent=1 // pred_check_branch
      %77 = sbr.rel (0) target = $region33
    $region32: #{fused_mlp_forward.1} parent=1 // pred_region
      %78 = dma.done [#allocation3], 128
    $region33: #{fused_mlp_forward.1} parent=1 // pred_fallthru
      _
    // Predicated region
    $region34: #{fused_mlp_forward.1} parent=1 // pred_check
      _
    $region35: #{fused_mlp_forward.1} parent=1 // pred_check_branch
      %80 = sbr.rel (0) target = $region37
    $region36: #{fused_mlp_forward.1} parent=1 // pred_region
      %81 = dma.done [#allocation6], 256
    $region37: #{fused_mlp_forward.1} parent=1 // pred_fallthru
      _
    // Predicated region
    $region38: #{fused_mlp_forward.1} parent=1 // pred_check
      _
    $region39: #{fused_mlp_forward.1} parent=1 // pred_check_branch
      %83 = sbr.rel (0) target = $region41
    $region40: #{fused_mlp_forward.1} parent=1 // pred_region
      %84 = dma.done [#allocation6], 1024
    $region41: #{fused_mlp_forward.1} parent=1 // pred_fallthru
      _
    // Predicated region
    $region42: #{fused_mlp_forward.1} parent=1 // pred_check
      _
    $region43: #{fused_mlp_forward.1} parent=1 // pred_check_branch
      %86 = sbr.rel (0) target = $region45
    $region44: #{fused_mlp_forward.1} parent=1 // pred_region
      %87 = dma.done [#allocation9], 1024
    $region45: #{fused_mlp_forward.1} parent=1 // pred_fallthru
      _
    // Predicated region
    $region46: #{fused_mlp_forward.1} parent=1 // pred_check
      _
    $region47: #{fused_mlp_forward.1} parent=1 // pred_check_branch
      %89 = sbr.rel (0) target = $region49
    $region48: #{fused_mlp_forward.1} parent=1 // pred_region
      %90 = dma.done [#allocation9], 128
    $region49: #{fused_mlp_forward.1} parent=1 // pred_fallthru
      _
    %v92 = vld [vmem:[#allocation2] sm:$0xff]
    %v93 = vld [vmem:[#allocation5] sm:$0xf]
    %v94 = vld [vmem:[#allocation5 + $0x4] sm:$0xf]
    %v95 = vld [vmem:[#allocation5 + $0x8] sm:$0xf]
    %v96 = vld [vmem:[#allocation5 + $0xc] sm:$0xf]
    %v97 = vld [vmem:[%s2] sm:$0xff]
    %v98 = vpack.c.bf16 %v92, %v92
    %v103 = vunpack.c.l.b16 %v93
    %v104 = vunpack.c.l.b16 %v94
    %v105 = vunpack.c.l.b16 %v95
    %v106 = vunpack.c.l.b16 %v96
    %v107 = vpack.c.b16 %v104, %v103
    %v108 = vpack.c.b16 %v106, %v105
    %vm111 = vcmask 261120
    %v113 = vsel %vm111, %v98, 0
    %115 = vmatprep.subr.bf16.mxu0 0
    %116 = vmatpush1.bf16.msra.mxu0 %v107
    %117 = vmatprep.subr.bf16.mxu0 0
    %118 = vmatpush1.bf16.msra.mxu0 %v108
    %119 = vmatprep.subr.bf16.mxu0 0
    %120 = vmatpush1.bf16.msra.mxu0 0
    %121 = vmatprep.subr.bf16.mxu0 0
    %122 = vmatpush1.bf16.msra.mxu0 0
    %123 = vmatprep.subr.bf16.mxu0 0
    %124 = vmatpush1.bf16.msra.mxu0 0
    %125 = vmatprep.subr.bf16.mxu0 0
    %126 = vmatpush1.bf16.msra.mxu0 0
    %127 = vmatprep.subr.bf16.mxu0 0
    %128 = vmatpush1.bf16.msra.mxu0 0
    %129 = vmatprep.subr.bf16.mxu0 0
    %130 = vmatpush1.bf16.msra.mxu0 0
    %131 = vmatprep.subr.bf16.mxu0 0
    %132 = vmatpush1.bf16.msra.mxu0 0
    %133 = vmatprep.subr.bf16.mxu0 0
    %134 = vmatpush1.bf16.msra.mxu0 0
    %135 = vmatprep.subr.bf16.mxu0 0
    %136 = vmatpush1.bf16.msra.mxu0 0
    %137 = vmatprep.subr.bf16.mxu0 0
    %138 = vmatpush1.bf16.msra.mxu0 0
    %139 = vmatprep.subr.bf16.mxu0 0
    %140 = vmatpush1.bf16.msra.mxu0 0
    %141 = vmatprep.subr.bf16.mxu0 0
    %142 = vmatpush1.bf16.msra.mxu0 0
    %143 = vmatprep.subr.bf16.mxu0 0
    %144 = vmatpush1.bf16.msra.mxu0 0
    %145 = vmatprep.subr.bf16.mxu0 0
    %146 = vmatpush1.bf16.msra.mxu0 0
    %147 = vmatprep.mubr.bf16.mxu0 0
    %148 = vmatmul.mubr.bf16.gmra.mrb[0].mxu0 %v113
    %v149 = vpop.f32.mrb[0].mxu0
    %v150 = vadd.f32 %v97, %v149
    %v151 = vpop.f32.mrb[0].mxu0
    %v152 = vpop.f32.mrb[0].mxu0
    %v153 = vpop.f32.mrb[0].mxu0
    %154 = vdwg.mxu0
    %v155 = vmax.f32 %v150, 0.0
    %v156 = vld [vmem:[#allocation7] sm:$0xf]
    %v157 = vld [vmem:[#allocation7 + $0x4] sm:$0xf]
    %v158 = vld [vmem:[#allocation7 + $0x8] sm:$0xf]
    %v159 = vld [vmem:[#allocation7 + $0xc] sm:$0xf]
    %v160 = vld [vmem:[#allocation7 + $0x10] sm:$0xf]
    %v161 = vld [vmem:[#allocation7 + $0x14] sm:$0xf]
    %v162 = vld [vmem:[#allocation7 + $0x18] sm:$0xf]
    %v163 = vld [vmem:[#allocation7 + $0x1c] sm:$0xf]
    %v164 = vld [vmem:[#allocation7 + $0x20] sm:$0xf]
    %v165 = vld [vmem:[#allocation7 + $0x24] sm:$0xf]
    %v166 = vld [vmem:[#allocation7 + $0x28] sm:$0xf]
    %v167 = vld [vmem:[#allocation7 + $0x2c] sm:$0xf]
    %v168 = vld [vmem:[#allocation7 + $0x30] sm:$0xf]
    %v169 = vld [vmem:[#allocation7 + $0x34] sm:$0xf]
    %v170 = vld [vmem:[#allocation7 + $0x38] sm:$0xf]
    %v171 = vld [vmem:[#allocation7 + $0x3c] sm:$0xf]
    %v172 = vld [vmem:[%s4] sm:$0xff]
    %v173 = vpack.c.bf16 %v155, %v155
    %v190 = vunpack.c.l.b16 %v156
    %v191 = vunpack.c.l.b16 %v157
    %v192 = vunpack.c.l.b16 %v158
    %v193 = vunpack.c.l.b16 %v159
    %v194 = vunpack.c.l.b16 %v160
    %v195 = vunpack.c.l.b16 %v161
    %v196 = vunpack.c.l.b16 %v162
    %v197 = vunpack.c.l.b16 %v163
    %v198 = vunpack.c.l.b16 %v164
    %v199 = vunpack.c.l.b16 %v165
    %v200 = vunpack.c.l.b16 %v166
    %v201 = vunpack.c.l.b16 %v167
    %v202 = vunpack.c.l.b16 %v168
    %v203 = vunpack.c.l.b16 %v169
    %v204 = vunpack.c.l.b16 %v170
    %v205 = vunpack.c.l.b16 %v171
    %v206 = vpack.c.b16 %v191, %v190
    %v207 = vpack.c.b16 %v193, %v192
    %v208 = vpack.c.b16 %v195, %v194
    %v209 = vpack.c.b16 %v197, %v196
    %v210 = vpack.c.b16 %v199, %v198
    %v211 = vpack.c.b16 %v201, %v200
    %v212 = vpack.c.b16 %v203, %v202
    %v213 = vpack.c.b16 %v205, %v204
    %222 = vmatprep.subr.bf16.mxu0 0
    %223 = vmatpush1.bf16.msra.mxu0 %v206
    %224 = vmatprep.subr.bf16.mxu0 0
    %225 = vmatpush1.bf16.msra.mxu0 %v207
    %226 = vmatprep.subr.bf16.mxu0 0
    %227 = vmatpush1.bf16.msra.mxu0 %v208
    %228 = vmatprep.subr.bf16.mxu0 0
    %229 = vmatpush1.bf16.msra.mxu0 %v209
    %230 = vmatprep.subr.bf16.mxu0 0
    %231 = vmatpush1.bf16.msra.mxu0 %v210
    %232 = vmatprep.subr.bf16.mxu0 0
    %233 = vmatpush1.bf16.msra.mxu0 %v211
    %234 = vmatprep.subr.bf16.mxu0 0
    %235 = vmatpush1.bf16.msra.mxu0 %v212
    %236 = vmatprep.subr.bf16.mxu0 0
    %237 = vmatpush1.bf16.msra.mxu0 %v213
    %238 = vmatprep.subr.bf16.mxu0 0
    %239 = vmatpush1.bf16.msra.mxu0 0
    %240 = vmatprep.subr.bf16.mxu0 0
    %241 = vmatpush1.bf16.msra.mxu0 0
    %242 = vmatprep.subr.bf16.mxu0 0
    %243 = vmatpush1.bf16.msra.mxu0 0
    %244 = vmatprep.subr.bf16.mxu0 0
    %245 = vmatpush1.bf16.msra.mxu0 0
    %246 = vmatprep.subr.bf16.mxu0 0
    %247 = vmatpush1.bf16.msra.mxu0 0
    %248 = vmatprep.subr.bf16.mxu0 0
    %249 = vmatpush1.bf16.msra.mxu0 0
    %250 = vmatprep.subr.bf16.mxu0 0
    %251 = vmatpush1.bf16.msra.mxu0 0
    %252 = vmatprep.subr.bf16.mxu0 0
    %253 = vmatpush1.bf16.msra.mxu0 0
    %254 = vmatprep.mubr.bf16.mxu0 0
    %255 = vmatmul.mubr.bf16.gmra.mrb[0].mxu0 %v173
    %v256 = vpop.f32.mrb[0].mxu0
    %v257 = vadd.f32 %v172, %v256
    %v258 = vpop.f32.mrb[0].mxu0
    %v259 = vpop.f32.mrb[0].mxu0
    %v260 = vpop.f32.mrb[0].mxu0
    %261 = vdwg.mxu0
    %v262 = vmax.f32 %v257, 0.0
    %v263 = vld [vmem:[#allocation8] sm:$0xf]
    %v264 = vld [vmem:[#allocation8 + $0x4] sm:$0xf]
    %v265 = vld [vmem:[#allocation8 + $0x8] sm:$0xf]
    %v266 = vld [vmem:[#allocation8 + $0xc] sm:$0xf]
    %v267 = vld [vmem:[#allocation8 + $0x10] sm:$0xf]
    %v268 = vld [vmem:[#allocation8 + $0x14] sm:$0xf]
    %v269 = vld [vmem:[#allocation8 + $0x18] sm:$0xf]
    %v270 = vld [vmem:[#allocation8 + $0x1c] sm:$0xf]
    %v271 = vld [vmem:[#allocation8 + $0x20] sm:$0xf]
    %v272 = vld [vmem:[#allocation8 + $0x24] sm:$0xf]
    %v273 = vld [vmem:[#allocation8 + $0x28] sm:$0xf]
    %v274 = vld [vmem:[#allocation8 + $0x2c] sm:$0xf]
    %v275 = vld [vmem:[#allocation8 + $0x30] sm:$0xf]
    %v276 = vld [vmem:[#allocation8 + $0x34] sm:$0xf]
    %v277 = vld [vmem:[#allocation8 + $0x38] sm:$0xf]
    %v278 = vld [vmem:[#allocation8 + $0x3c] sm:$0xf]
    %v279 = vld [vmem:[#allocation10] sm:$0xff]
    %v280 = vpack.c.bf16 %v262, %v262
    %v297 = vunpack.c.l.b16 %v263
    %v298 = vunpack.c.l.b16 %v264
    %v299 = vunpack.c.l.b16 %v265
    %v300 = vunpack.c.l.b16 %v266
    %v301 = vunpack.c.l.b16 %v267
    %v302 = vunpack.c.l.b16 %v268
    %v303 = vunpack.c.l.b16 %v269
    %v304 = vunpack.c.l.b16 %v270
    %v305 = vunpack.c.l.b16 %v271
    %v306 = vunpack.c.l.b16 %v272
    %v307 = vunpack.c.l.b16 %v273
    %v308 = vunpack.c.l.b16 %v274
    %v309 = vunpack.c.l.b16 %v275
    %v310 = vunpack.c.l.b16 %v276
    %v311 = vunpack.c.l.b16 %v277
    %v312 = vunpack.c.l.b16 %v278
    %v313 = vpack.c.b16 %v298, %v297
    %v314 = vpack.c.b16 %v300, %v299
    %v315 = vpack.c.b16 %v302, %v301
    %v316 = vpack.c.b16 %v304, %v303
    %v317 = vpack.c.b16 %v306, %v305
    %v318 = vpack.c.b16 %v308, %v307
    %v319 = vpack.c.b16 %v310, %v309
    %v320 = vpack.c.b16 %v312, %v311
    %329 = vmatprep.subr.bf16.mxu0 0
    %330 = vmatpush1.bf16.msra.mxu0 %v313
    %331 = vmatprep.subr.bf16.mxu0 0
    %332 = vmatpush1.bf16.msra.mxu0 %v314
    %333 = vmatprep.subr.bf16.mxu0 0
    %334 = vmatpush1.bf16.msra.mxu0 %v315
    %335 = vmatprep.subr.bf16.mxu0 0
    %336 = vmatpush1.bf16.msra.mxu0 %v316
    %337 = vmatprep.subr.bf16.mxu0 0
    %338 = vmatpush1.bf16.msra.mxu0 %v317
    %339 = vmatprep.subr.bf16.mxu0 0
    %340 = vmatpush1.bf16.msra.mxu0 %v318
    %341 = vmatprep.subr.bf16.mxu0 0
    %342 = vmatpush1.bf16.msra.mxu0 %v319
    %343 = vmatprep.subr.bf16.mxu0 0
    %344 = vmatpush1.bf16.msra.mxu0 %v320
    %345 = vmatprep.subr.bf16.mxu0 0
    %346 = vmatpush1.bf16.msra.mxu0 0
    %347 = vmatprep.subr.bf16.mxu0 0
    %348 = vmatpush1.bf16.msra.mxu0 0
    %349 = vmatprep.subr.bf16.mxu0 0
    %350 = vmatpush1.bf16.msra.mxu0 0
    %351 = vmatprep.subr.bf16.mxu0 0
    %352 = vmatpush1.bf16.msra.mxu0 0
    %353 = vmatprep.subr.bf16.mxu0 0
    %354 = vmatpush1.bf16.msra.mxu0 0
    %355 = vmatprep.subr.bf16.mxu0 0
    %356 = vmatpush1.bf16.msra.mxu0 0
    %357 = vmatprep.subr.bf16.mxu0 0
    %358 = vmatpush1.bf16.msra.mxu0 0
    %359 = vmatprep.subr.bf16.mxu0 0
    %360 = vmatpush1.bf16.msra.mxu0 0
    %361 = vmatprep.mubr.bf16.mxu0 0
    %362 = vmatmul.mubr.bf16.gmra.mrb[0].mxu0 %v280
    %v363 = vpop.f32.mrb[0].mxu0
    %v364 = vadd.f32 %v279, %v363
    %v365 = vpop.f32.mrb[0].mxu0
    %v366 = vpop.f32.mrb[0].mxu0
    %v367 = vpop.f32.mrb[0].mxu0
    %368 = vdwg.mxu0
    %369 = vst [vmem:[#allocation11] sm:$0xff] %v364
    // Predicated region
    $region50: #{fused_mlp_forward.1} parent=1 // pred_check
      _
    $region51: #{fused_mlp_forward.1} parent=1 // pred_check_branch
      %371 = sbr.rel (0) target = $region53
    $region52: #{fused_mlp_forward.1} parent=1 // pred_region
      %s373 = ssub.s32 128, 128
      %374 = vsyncadd [#allocation4], %s373
      %s376 = sshll.u32 [#allocation11], 4
      %s377 = int_to_ptr.vmem [resolvable:$true] %s376
      %379 = dma.vmem_to_hbm [thread:$0]  %s377, 128, %s7, [#allocation4]
    $region53: #{fused_mlp_forward.1} parent=1 // pred_fallthru
      _
    // Predicated region
    $region54: #{fused_mlp_forward.1} parent=1 // pred_check
      _
    $region55: #{fused_mlp_forward.1} parent=1 // pred_check_branch
      %381 = sbr.rel (0) target = $region57
    $region56: #{fused_mlp_forward.1} parent=1 // pred_region
      %382 = dma.done [#allocation4], 128
    $region57: #{fused_mlp_forward.1} parent=1 // pred_fallthru
      _
    %383 = vsyncpa [#allocation3], 1
    %384 = vsyncpa [#allocation6], 1
    %385 = vsyncpa [#allocation9], 1
    %386 = vsyncpa [#allocation4], 1

</llo_original>
